<compile_context>
chip_gen: v6e
topology: v6e:2x2x1
jax: 0.10.0
libtpu: 0.0.40
codegen_flags: <defaults>
</compile_context>

<pallas_src>
import math

import jax
import jax.numpy as jnp
from jax.experimental import pallas as pl
from jax.experimental.pallas import tpu as pltpu


def _round_up(n, k):
    return ((n + k - 1) // k) * k


def _feature_regression_kernel(x_ref, wt_ref, b_ref, o_ref):
    # x_ref:  [TB, Dp] bf16   batch tile, full (padded) feature dim
    # wt_ref: [Dp, TN] bf16   pre-masked, pre-transposed weight tile
    # b_ref:  [1,  TN] f32    bias tile
    # o_ref:  [TB, TN] out    output tile
    z = jax.lax.dot_general(
        x_ref[...], wt_ref[...],
        dimension_numbers=(((1,), (0,)), ((), ())),  # contract x dim 1 with wt dim 0
        preferred_element_type=jnp.float32,          # f32 accumulation on the MXU
    )                                                # [TB, TN] f32
    z = z + b_ref[...]                               # broadcast [1, TN]
    o_ref[...] = jax.nn.sigmoid(z).astype(o_ref.dtype)


def feature_regression(x, W, b, *, block_b=None):
    """x: [B, D], W: [D, D], b: [D] -> sigmoid(x @ (W*(1-I))^T + b), shape [B, D]."""
    B, D = x.shape
    out_dtype = x.dtype
    stream_dtype = jnp.bfloat16  # stream x / W^T in bf16, accumulate in f32

    # ---- hoisted, one-time parameter prep (outside the grid) ----------------
    # Zero the diagonal once and pre-transpose (the mask is symmetric, so
    # masking commutes with the transpose).
    eye = jnp.eye(D, dtype=W.dtype)
    wt = (W * (1.0 - eye)).T.astype(stream_dtype)     # [D, D]
    b2d = b.astype(jnp.float32).reshape(1, D)         # [1, D]

    # Lane-dense feature dim: pad to a multiple of 128 with zeros.
    # (Zero-padded x columns hit zero-padded W^T rows, so they contribute 0;
    # padded output columns are sliced off below.)
    Dp = max(128, _round_up(D, 128))
    if Dp != D:
        wt = jnp.pad(wt, ((0, Dp - D), (0, Dp - D)))
        b2d = jnp.pad(b2d, ((0, 0), (0, Dp - D)))
        x_in = jnp.pad(x.astype(stream_dtype), ((0, 0), (0, Dp - D)))
    else:
        x_in = x.astype(stream_dtype)

    # ---- tile selection ------------------------------------------------------
    # Output-feature (N) tile: keep the weight working set bounded so it fits
    # v7x's 64 MiB VMEM; if the whole [Dp, Dp] bf16 weight fits the budget it
    # stays resident (single-buffered) across the whole grid.
    WT_BUDGET = 24 << 20
    if Dp * Dp * 2 <= WT_BUDGET:
        tn = Dp
    else:
        tn = max(128, (WT_BUDGET // (Dp * 2 * 2)) // 128 * 128)
    tn = min(tn, Dp)
    n_tiles = pl.cdiv(Dp, tn)
    wt_resident = (n_tiles == 1)

    # Batch tile: no jnp.pad of x on the batch axis -- the ragged last block is
    # handled by Pallas masked stores. Default aims for >= 2 grid steps
    # (megacore split on v7x + DMA/compute overlap) with tiles up to 1024 rows.
    if block_b is None:
        block_b = min(1024, max(8, _round_up(pl.cdiv(B, 2), 8)))
    else:
        block_b = max(8, _round_up(block_b, 8))
    # Cap so the double-buffered x tile stays within budget, and don't exceed B.
    X_TILE_BUDGET = 16 << 20
    max_bb = max(8, (X_TILE_BUDGET // (2 * 2 * Dp)) // 8 * 8)
    block_b = min(block_b, max_bb, max(8, _round_up(B, 8)))
    nb = pl.cdiv(B, block_b)

    # ---- VMEM budget / cost hint --------------------------------------------
    out_itemsize = jnp.dtype(out_dtype).itemsize
    wt_bufs = 1 if wt_resident else 2
    needed = (2 * block_b * Dp * 2                      # x tile, double-buffered bf16
              + wt_bufs * Dp * tn * 2                   # weight tile(s), bf16
              + wt_bufs * tn * 4                        # bias tile(s), f32
              + 2 * block_b * tn * out_itemsize)        # out tiles
    vmem_limit = int(min(64 << 20, max(32 << 20, 2 * needed)))

    cost = pl.CostEstimate(
        flops=2 * B * Dp * Dp,
        transcendentals=B * Dp,                         # sigmoid exp (EUP)
        bytes_accessed=(B * Dp * 2 + Dp * Dp * 2 + Dp * 4 + B * Dp * out_itemsize),
    )

    # ---- BlockSpecs -----------------------------------------------------------
    x_spec = pl.BlockSpec((block_b, Dp), lambda i, j: (i, 0))
    if wt_resident:
        # Constant index map -> single buffer (double-buffering a resident
        # operand is pure VMEM waste; matters on v7x's smaller VMEM).
        wt_spec = pl.BlockSpec((Dp, tn), lambda i, j: (0, j),
                               pipeline_mode=pl.Buffered(1))
        b_spec = pl.BlockSpec((1, tn), lambda i, j: (0, j),
                              pipeline_mode=pl.Buffered(1))
    else:
        wt_spec = pl.BlockSpec((Dp, tn), lambda i, j: (0, j))
        b_spec = pl.BlockSpec((1, tn), lambda i, j: (0, j))
    out_spec = pl.BlockSpec((block_b, tn), lambda i, j: (i, j))

    out = pl.pallas_call(
        _feature_regression_kernel,
        out_shape=jax.ShapeDtypeStruct((B, Dp), out_dtype),
        grid_spec=pltpu.PrefetchScalarGridSpec(
            num_scalar_prefetch=0,
            grid=(nb, n_tiles),
            in_specs=[x_spec, wt_spec, b_spec],
            out_specs=out_spec,
        ),
        compiler_params=pltpu.CompilerParams(
            # Independent output tiles on both axes -> megacore (v7x) splits
            # them and the pipeline double-buffers x/out DMAs against the MXU.
            dimension_semantics=("parallel", "parallel"),
            vmem_limit_bytes=vmem_limit,
        ),
        cost_estimate=cost,
    )(x_in, wt, b2d)

    return out[:, :D] if Dp != D else out


def _reference(x, W, b):
    # Pure-JAX f32 reference mirroring the PyTorch forward.
    D = W.shape[0]
    m = jnp.ones((D, D), W.dtype) - jnp.eye(D, dtype=W.dtype)
    return jax.nn.sigmoid(x @ (W * m).T + b)


if __name__ == "__main__":
    key = jax.random.PRNGKey(0)
    batch, input_size = 16, 32

    kx, kw, kb = jax.random.split(key, 3)

    # Deterministic parameter init mirroring reset_parameters():
    #   uniform(-stdv, stdv), stdv = 1/sqrt(input_size)
    stdv = 1.0 / math.sqrt(input_size)
    W = jax.random.uniform(
        kw, (input_size, input_size), jnp.float32, minval=-stdv, maxval=stdv
    )
    b = jax.random.uniform(
        kb, (input_size,), jnp.float32, minval=-stdv, maxval=stdv
    )
    x = jax.random.normal(kx, (batch, input_size), jnp.float32)

    # Default tiling: block_b = 8 here -> grid (2, 1), exercising the multi-step
    # batch-tiled path (and the megacore split on v7x).
    out = feature_regression(x, W, b)
    jax.block_until_ready(out)

    ref = _reference(x, W, b)
    assert out.shape == (batch, input_size)
    assert out.dtype == x.dtype
    # bf16 streaming with f32 accumulation -> loosened tolerance vs f32 ref.
    max_err = float(jnp.max(jnp.abs(out - ref)))
    assert max_err < 2e-2, f"max abs error {max_err}"

    print("KERNEL_OK")
</pallas_src>

<mosaic_0001>
module attributes {stable_mosaic.version = 11 : i64} {
  func.func @_feature_regression_kernel(%arg0: i32, %arg1: i32, %arg2: memref<8x128xbf16, #tpu.memory_space<vmem>>, %arg3: memref<128x128xbf16, #tpu.memory_space<vmem>>, %arg4: memref<1x128xf32, #tpu.memory_space<vmem>>, %arg5: memref<8x128xf32, #tpu.memory_space<vmem>>) attributes {dimension_semantics = [#tpu.dimension_semantics<parallel>, #tpu.dimension_semantics<parallel>], iteration_bounds = array<i64: 2, 1>, scalar_prefetch = 0 : i64, scratch_operands = 0 : i64, tpu.core_type = #tpu.core_type<tc>, window_params = [{transform_indices = @transform_0, window_bounds = array<i64: 8, 128>}, {pipeline_mode = #tpu.pipeline_mode<synchronous>, transform_indices = @transform_1, window_bounds = array<i64: 128, 128>}, {pipeline_mode = #tpu.pipeline_mode<synchronous>, transform_indices = @transform_2, window_bounds = array<i64: 1, 128>}, {transform_indices = @transform_3, window_bounds = array<i64: 8, 128>}]} {
    %c0 = arith.constant 0 : index
    %c0_0 = arith.constant 0 : index
    %0 = vector.load %arg2[%c0, %c0_0] : memref<8x128xbf16, #tpu.memory_space<vmem>>, vector<8x128xbf16>
    %c0_1 = arith.constant 0 : index
    %c0_2 = arith.constant 0 : index
    %1 = vector.load %arg3[%c0_1, %c0_2] : memref<128x128xbf16, #tpu.memory_space<vmem>>, vector<128x128xbf16>
    %cst = arith.constant dense<0.000000e+00> : vector<8x128xf32>
    %2 = tpu.matmul %0, %1, %cst {dimension_numbers = #tpu.dot_dimension_numbers<[1], [0], [0], [1], [0, 0, 1, 1], [], []>} : vector<8x128xbf16>, vector<128x128xbf16>, vector<8x128xf32> -> vector<8x128xf32>
    %c0_3 = arith.constant 0 : index
    %c0_4 = arith.constant 0 : index
    %3 = vector.load %arg4[%c0_3, %c0_4] : memref<1x128xf32, #tpu.memory_space<vmem>>, vector<1x128xf32>
    %4 = vector.broadcast %3 : vector<1x128xf32> to vector<8x128xf32>
    %5 = arith.addf %2, %4 : vector<8x128xf32>
    %6 = arith.negf %5 : vector<8x128xf32>
    %7 = math.exp %6 : vector<8x128xf32>
    %cst_5 = arith.constant 1.000000e+00 : f32
    %8 = vector.broadcast %cst_5 : f32 to vector<8x128xf32>
    %9 = arith.addf %8, %7 : vector<8x128xf32>
    %10 = arith.divf %8, %9 : vector<8x128xf32>
    %c0_6 = arith.constant 0 : index
    %c0_7 = arith.constant 0 : index
    %11 = vector.load %arg5[%c0_6, %c0_7] : memref<8x128xf32, #tpu.memory_space<vmem>>, vector<8x128xf32>
    tpu.vector_store %arg5[%c0_6, %c0_7], %10 {strides = array<i32>} : memref<8x128xf32, #tpu.memory_space<vmem>>, vector<8x128xf32>,
    return
  }
  func.func @transform_0(%arg0: i32, %arg1: i32) -> (i32, i32) {
    %c0_i32 = arith.constant 0 : i32
    %c0_i32_0 = arith.constant 0 : i32
    return %arg0, %c0_i32 : i32, i32
  }
  func.func @transform_1(%arg0: i32, %arg1: i32) -> (i32, i32) {
    %c0_i32 = arith.constant 0 : i32
    %c0_i32_0 = arith.constant 0 : i32
    return %c0_i32, %arg1 : i32, i32
  }
  func.func @transform_2(%arg0: i32, %arg1: i32) -> (i32, i32) {
    %c0_i32 = arith.constant 0 : i32
    %c0_i32_0 = arith.constant 0 : i32
    return %c0_i32, %arg1 : i32, i32
  }
  func.func @transform_3(%arg0: i32, %arg1: i32) -> (i32, i32) {
    %c0_i32 = arith.constant 0 : i32
    return %arg0, %arg1 : i32, i32
  }
}

</mosaic_0001>

<llo_original>
// kernel: tpu_custom_call.1
$region0: #{tpu_custom_call.1}
  #allocation0 [shape = 'u32[]', space=smem, size = 0x4, offset = 0x4, fixed_abs, tag = 'smem constant byte address 0x4 - core index']
  #allocation1 [shape = 'u32[144,128]{1,0:T(1,128)}', space=vmem, size = 0x12000, scoped, tag = 'internal scratch']
  %s0 = inlined_call_operand.hbm [shape: bf16[16,128], index: 0, kind: input, shape index: {}]
  %s1 = inlined_call_operand.hbm [shape: bf16[128,128], index: 1, kind: input, shape index: {}]
  %s2 = inlined_call_operand.vmem [shape: f32[1,128], index: 2, kind: input, shape index: {}]
  %s3 = inlined_call_operand.hbm [shape: f32[16,128], index: 3, kind: output, shape index: {}]
  %s4 = sld [smem:[#allocation0]]
  $region53: #{tpu_custom_call.1} parent=0
    _
  %s6 = ssub.s32 1, %s4
  %s7 = scalar_select 0, %s6, %s4
  $region1: #{tpu_custom_call.1} parent=0
    #allocation2 [shape = 'u8[4096]{0}', space=vmem, size = 0x1000, scoped, tag = 'input window, operand 0']
    #allocation3 [shape = 's32[2]{0}', space=sflag, size = 0x8, scoped, tag = 'scoped memory for tpu_custom_call.1']
    #allocation4 [shape = 's32[2]{0}', space=sflag, size = 0x8, scoped, tag = 'scoped memory for tpu_custom_call.1']
    #allocation5 [shape = 'u8[32768]{0}', space=vmem, size = 0x8000, scoped, tag = 'input window, operand 1, single buffered']
    #allocation6 [shape = 's32[1]{0}', space=sflag, size = 0x4, scoped, tag = 'scoped memory for tpu_custom_call.1']
    #allocation7 [shape = 'u8[8192]{0}', space=vmem, size = 0x2000, scoped, tag = 'output window, operand 0']
    %8 = vsyncpa [#allocation3], 0
    %s9 = scalar_lea.sflag [#allocation3], 1
    %10 = vsyncpa %s9, 0
    %11 = vsyncpa [#allocation6], 0
    %12 = vsyncpa [#allocation4], 0
    %s13 = scalar_lea.sflag [#allocation4], 1
    %14 = vsyncpa %s13, 0
    loop: start=0, step=1, limit=4
    $region2: #{tpu_custom_call.1} parent=1 // loop_pre_header
      _
    $region3: #{tpu_custom_call.1} parent=1 // loop_header
      %s16 = sphi 0, %s20
      %p17 = scmp.ge.s32.totalorder %s16, 4
      %s23 = sphi 0, %s35
      %s24 = sphi 0, %s31
      %s25 = sphi 0, %s23
      %s26 = sphi 0, %s24
      %s27 = sphi 0, %s25
      %s28 = sphi 0, %s26
      %s38 = sphi 0, %s40
      %s41 = sphi 0, %s38
      %s42 = sphi 0, %s41
      %s58 = sphi 0, %s42
      %s64 = sphi 0, %s66
      %s67 = sphi 0, %s64
      %s68 = sphi 0, %s67
      %s84 = sphi 0, %s68
      %s90 = sphi 0, %s92
      %s93 = sphi 0, %s90
      %s94 = sphi 0, %s93
      %s110 = sphi 0, %s94
      %s118 = sphi 0, %s120
      %s121 = sphi 0, %s118
      %s122 = sphi 0, %s121
      %s138 = sphi 0, %s122
    $region4: #{tpu_custom_call.1} parent=1 // loop_header_branch
      %19 = sbr.rel (%p17) target = $region8
    $region5: #{tpu_custom_call.1} parent=1 // loop_body
      %s21 = ssub.s32 %s16, 1
      %s22 = ssub.s32 %s16, 2
      %s29 = sadd.s32 1, %s24
      %p30 = scmp.ge.s32.totalorder %s29, 1
      %s31 = scalar_select %p30, 0, %s29
      %s32 = sadd.s32 1, %s23
      %s33 = scalar_select %p30, %s32, %s23
      %p34 = scmp.ge.s32.totalorder %s33, 2
      %s35 = scalar_select %p34, 0, %s33
      %s36 = ssub.s32 %s23, %s35
      %p37 = scmp.eq.s32.totalorder %s36, 0
      %s39 = sadd.s32 %s38, 1
      %s40 = scalar_select %p37, %s38, %s39
      %p43 = pneg %p37
      %p44 = scmp.eq.s32.totalorder %s16, 1
      %p45 = por %p43, %p44
      %p46 = scmp.ne.s32.totalorder %s38, %s41
      %p47 = scmp.eq.s32.totalorder %s16, 0
      %p48 = por %p46, %p47
      %p49 = scmp.ne.s32.totalorder %s38, %s41
      %p50 = scmp.eq.s32.totalorder %s21, 1
      %p51 = por %p49, %p50
      %p52 = scmp.ne.s32.totalorder %s41, %s42
      %p53 = scmp.eq.s32.totalorder %s21, 0
      %p54 = por %p52, %p53
      %p55 = scmp.ne.s32.totalorder %s41, %s42
      %p56 = scmp.eq.s32.totalorder %s22, 1
      %p57 = por %p55, %p56
      %p59 = scmp.ne.s32.totalorder %s42, %s58
      %p60 = scmp.eq.s32.totalorder %s22, 0
      %p61 = por %p59, %p60
      %s62 = ssub.s32 %s24, %s31
      %p63 = scmp.eq.s32.totalorder %s62, 0
      %s65 = sadd.s32 %s64, 1
      %s66 = scalar_select %p63, %s64, %s65
      %p69 = pneg %p63
      %p70 = scmp.eq.s32.totalorder %s16, 1
      %p71 = por %p69, %p70
      %p72 = scmp.ne.s32.totalorder %s64, %s67
      %p73 = scmp.eq.s32.totalorder %s16, 0
      %p74 = por %p72, %p73
      %p75 = scmp.ne.s32.totalorder %s64, %s67
      %p76 = scmp.eq.s32.totalorder %s21, 1
      %p77 = por %p75, %p76
      %p78 = scmp.ne.s32.totalorder %s67, %s68
      %p79 = scmp.eq.s32.totalorder %s21, 0
      %p80 = por %p78, %p79
      %p81 = scmp.ne.s32.totalorder %s67, %s68
      %p82 = scmp.eq.s32.totalorder %s22, 1
      %p83 = por %p81, %p82
      %p85 = scmp.ne.s32.totalorder %s68, %s84
      %p86 = scmp.eq.s32.totalorder %s22, 0
      %p87 = por %p85, %p86
      %s88 = ssub.s32 %s24, %s31
      %p89 = scmp.eq.s32.totalorder %s88, 0
      %s91 = sadd.s32 %s90, 1
      %s92 = scalar_select %p89, %s90, %s91
      %p95 = pneg %p89
      %p96 = scmp.eq.s32.totalorder %s16, 1
      %p97 = por %p95, %p96
      %p98 = scmp.ne.s32.totalorder %s90, %s93
      %p99 = scmp.eq.s32.totalorder %s16, 0
      %p100 = por %p98, %p99
      %p101 = scmp.ne.s32.totalorder %s90, %s93
      %p102 = scmp.eq.s32.totalorder %s21, 1
      %p103 = por %p101, %p102
      %p104 = scmp.ne.s32.totalorder %s93, %s94
      %p105 = scmp.eq.s32.totalorder %s21, 0
      %p106 = por %p104, %p105
      %p107 = scmp.ne.s32.totalorder %s93, %s94
      %p108 = scmp.eq.s32.totalorder %s22, 1
      %p109 = por %p107, %p108
      %p111 = scmp.ne.s32.totalorder %s94, %s110
      %p112 = scmp.eq.s32.totalorder %s22, 0
      %p113 = por %p111, %p112
      %s114 = ssub.s32 %s23, %s35
      %s115 = ssub.s32 %s24, %s31
      %s116 = sor.u32 %s114, %s115
      %p117 = scmp.eq.s32.totalorder %s116, 0
      %s119 = sadd.s32 %s118, 1
      %s120 = scalar_select %p117, %s118, %s119
      %p123 = pneg %p117
      %p124 = scmp.eq.s32.totalorder %s16, 1
      %p125 = por %p123, %p124
      %p126 = scmp.ne.s32.totalorder %s118, %s121
      %p127 = scmp.eq.s32.totalorder %s16, 0
      %p128 = por %p126, %p127
      %p129 = scmp.ne.s32.totalorder %s118, %s121
      %p130 = scmp.eq.s32.totalorder %s21, 1
      %p131 = por %p129, %p130
      %p132 = scmp.ne.s32.totalorder %s121, %s122
      %p133 = scmp.eq.s32.totalorder %s21, 0
      %p134 = por %p132, %p133
      %p135 = scmp.ne.s32.totalorder %s121, %s122
      %p136 = scmp.eq.s32.totalorder %s22, 1
      %p137 = por %p135, %p136
      %p139 = scmp.ne.s32.totalorder %s122, %s138
      %p140 = scmp.eq.s32.totalorder %s22, 0
      %p141 = por %p139, %p140
      %p142 = scmp.le.s32.totalorder 1, %s16
      %p143 = scmp.lt.s32.totalorder %s16, 3
      %p144 = pnand %p142, %p143
      %p145 = pneg %p144
      // Predicated region
      $region9: #{tpu_custom_call.1} parent=5 // pred_check
        _
      $region10: #{tpu_custom_call.1} parent=5 // pred_check_branch
        %147 = sbr.rel (%p144) target = $region12
      $region11: #{tpu_custom_call.1} parent=5 // pred_region
        %s148 = ssub.s32 %s16, 1
        // Predicated region
        $region13: #{tpu_custom_call.1} parent=11 // pred_check
          %p149 = pneg %p80
        $region14: #{tpu_custom_call.1} parent=11 // pred_check_branch
          %151 = sbr.rel (%p149) target = $region16
        $region15: #{tpu_custom_call.1} parent=11 // pred_region
          %s153 = ssub.s32 1024, 1024
          %154 = vsyncadd [#allocation6], %s153
          %s155 = smul.addr %s26, 64
          %s156 = scalar_lea.hbm %s1, %s155
          %s157 = sshll.u32 [#allocation5], 4
          %s158 = int_to_ptr.vmem [resolvable:$true] %s157
          %163 = dma.hbm_to_vmem [thread:$0]  %s156, 1024, %s158, [#allocation6], 64, 64, 4
        $region16: #{tpu_custom_call.1} parent=11 // pred_fallthru
          _
        // Predicated region
        $region17: #{tpu_custom_call.1} parent=11 // pred_check
          %p164 = pneg %p106
        $region18: #{tpu_custom_call.1} parent=11 // pred_check_branch
          %166 = sbr.rel (%p164) target = $region20
        $region19: #{tpu_custom_call.1} parent=11 // pred_region
          %p167 = scmp.lt.s32.totalorder %s26, 0
          %s168 = scalar_select %p167, %s26, 0
          %s169 = scalar_lea.vmem %s2, %s168
        $region20: #{tpu_custom_call.1} parent=11 // pred_fallthru
          _
      $region12: #{tpu_custom_call.1} parent=5 // pred_fallthru
        _
      %p170 = scmp.lt.s32.totalorder %s16, 2
      // Predicated region
      $region21: #{tpu_custom_call.1} parent=5 // pred_check
        %p171 = pneg %p170
      $region22: #{tpu_custom_call.1} parent=5 // pred_check_branch
        %173 = sbr.rel (%p171) target = $region24
      $region23: #{tpu_custom_call.1} parent=5 // pred_region
        // Predicated region
        $region25: #{tpu_custom_call.1} parent=23 // pred_check
          %p174 = pneg %p48
        $region26: #{tpu_custom_call.1} parent=23 // pred_check_branch
          %176 = sbr.rel (%p174) target = $region28
        $region27: #{tpu_custom_call.1} parent=23 // pred_region
          %s177 = sand.u32 %s38, 1
          %s178 = scalar_lea.sflag [#allocation3], %s177
          %s179 = sand.u32 %s38, 1
          %s180 = smul.addr %s179, 4
          %s181 = scalar_lea.vmem [#allocation2], %s180
          %s183 = ssub.s32 64, 64
          %184 = vsyncadd %s178, %s183
          %s185 = smul.addr %s23, 64
          %s186 = scalar_lea.hbm %s0, %s185
          %s188 = sshll.u32 %s181, 4
          %s189 = int_to_ptr.vmem [resolvable:$true] %s188
          %191 = dma.hbm_to_vmem [thread:$0]  %s186, 64, %s189, %s178
        $region28: #{tpu_custom_call.1} parent=23 // pred_fallthru
          _
      $region24: #{tpu_custom_call.1} parent=5 // pred_fallthru
        _
      %p192 = scmp.le.s32.totalorder 1, %s16
      %p193 = scmp.lt.s32.totalorder %s16, 3
      %p194 = pnand %p192, %p193
      %p195 = pneg %p194
      // Predicated region
      $region29: #{tpu_custom_call.1} parent=5 // pred_check
        _
      $region30: #{tpu_custom_call.1} parent=5 // pred_check_branch
        %197 = sbr.rel (%p194) target = $region32
      $region31: #{tpu_custom_call.1} parent=5 // pred_region
        %s198 = ssub.s32 %s16, 1
        %s199 = sand.u32 %s41, 1
        %s200 = scalar_lea.sflag [#allocation3], %s199
        %s201 = sand.u32 %s41, 1
        %s202 = smul.addr %s201, 4
        %s203 = scalar_lea.vmem [#allocation2], %s202
        // Predicated region
        $region33: #{tpu_custom_call.1} parent=31 // pred_check
          %p204 = pneg %p54
        $region34: #{tpu_custom_call.1} parent=31 // pred_check_branch
          %206 = sbr.rel (%p204) target = $region36
        $region35: #{tpu_custom_call.1} parent=31 // pred_region
          %207 = dma.done %s200, 64
        $region36: #{tpu_custom_call.1} parent=31 // pred_fallthru
          _
        // Predicated region
        $region37: #{tpu_custom_call.1} parent=31 // pred_check
          %p208 = pneg %p80
        $region38: #{tpu_custom_call.1} parent=31 // pred_check_branch
          %210 = sbr.rel (%p208) target = $region40
        $region39: #{tpu_custom_call.1} parent=31 // pred_region
          %211 = dma.done [#allocation6], 1024
        $region40: #{tpu_custom_call.1} parent=31 // pred_fallthru
          _
        %s212 = sand.u32 %s41, 1
        %s213 = scalar_lea.sflag [#allocation3], %s212
        %s214 = sand.u32 %s41, 1
        %s215 = smul.addr %s214, 4
        %s216 = scalar_lea.vmem [#allocation2], %s215
        %p217 = pneg %p54
        %p218 = pneg %p51
        %p219 = pneg %p80
        %p220 = pneg %p77
        %p221 = scmp.lt.s32.totalorder %s26, 0
        %s222 = scalar_select %p221, %s26, 0
        %s223 = scalar_lea.vmem %s2, %s222
        %p224 = pneg %p106
        %p225 = pneg %p103
        %p226 = pneg %p134
        %p227 = pneg %p131
        %s228 = sand.u32 %s121, 1
        %s229 = scalar_lea.sflag [#allocation4], %s228
        %s230 = sand.u32 %s121, 1
        %s231 = smul.addr %s230, 8
        %s232 = scalar_lea.vmem [#allocation7], %s231
        %p233 = scmp.lt.s32.totalorder %s26, 0
        %s234 = scalar_select %p233, %s26, 0
        %s235 = scalar_lea.vmem %s2, %s234
        %v237 = vld [vmem:[%s203] sm:$0xf]
        %v238 = vld [vmem:[#allocation5] sm:$0xf]
        %v239 = vld [vmem:[#allocation5 + $0x4] sm:$0xf]
        %v240 = vld [vmem:[#allocation5 + $0x8] sm:$0xf]
        %v241 = vld [vmem:[#allocation5 + $0xc] sm:$0xf]
        %v242 = vld [vmem:[#allocation5 + $0x10] sm:$0xf]
        %v243 = vld [vmem:[#allocation5 + $0x14] sm:$0xf]
        %v244 = vld [vmem:[#allocation5 + $0x18] sm:$0xf]
        %v245 = vld [vmem:[#allocation5 + $0x1c] sm:$0xf]
        %v246 = vld [vmem:[#allocation5 + $0x20] sm:$0xf]
        %v247 = vld [vmem:[#allocation5 + $0x24] sm:$0xf]
        %v248 = vld [vmem:[#allocation5 + $0x28] sm:$0xf]
        %v249 = vld [vmem:[#allocation5 + $0x2c] sm:$0xf]
        %v250 = vld [vmem:[#allocation5 + $0x30] sm:$0xf]
        %v251 = vld [vmem:[#allocation5 + $0x34] sm:$0xf]
        %v252 = vld [vmem:[#allocation5 + $0x38] sm:$0xf]
        %v253 = vld [vmem:[#allocation5 + $0x3c] sm:$0xf]
        %v254 = vld [vmem:[%s235] sm:$0x1]
        %v256 = vlaneseq
        %v257 = vshrl.u32 %v256, 7
        %v258 = vsub.s32 0, %v257
        %v259 = vrot.slane %v254, %v258
        %v277 = vunpack.c.l.b16 %v238
        %v278 = vunpack.c.l.b16 %v239
        %v279 = vunpack.c.l.b16 %v240
        %v280 = vunpack.c.l.b16 %v241
        %v281 = vunpack.c.l.b16 %v242
        %v282 = vunpack.c.l.b16 %v243
        %v283 = vunpack.c.l.b16 %v244
        %v284 = vunpack.c.l.b16 %v245
        %v285 = vunpack.c.l.b16 %v246
        %v286 = vunpack.c.l.b16 %v247
        %v287 = vunpack.c.l.b16 %v248
        %v288 = vunpack.c.l.b16 %v249
        %v289 = vunpack.c.l.b16 %v250
        %v290 = vunpack.c.l.b16 %v251
        %v291 = vunpack.c.l.b16 %v252
        %v292 = vunpack.c.l.b16 %v253
        %v293 = vpack.c.b16 %v278, %v277
        %v294 = vpack.c.b16 %v280, %v279
        %v295 = vpack.c.b16 %v282, %v281
        %v296 = vpack.c.b16 %v284, %v283
        %v297 = vpack.c.b16 %v286, %v285
        %v298 = vpack.c.b16 %v288, %v287
        %v299 = vpack.c.b16 %v290, %v289
        %v300 = vpack.c.b16 %v292, %v291
        %309 = vmatprep.subr.bf16.mxu0 0
        %310 = vmatpush1.bf16.msra.mxu0 %v300
        %311 = vmatprep.subr.bf16.mxu0 0
        %312 = vmatpush1.bf16.msra.mxu0 %v299
        %313 = vmatprep.subr.bf16.mxu0 0
        %314 = vmatpush1.bf16.msra.mxu0 %v298
        %315 = vmatprep.subr.bf16.mxu0 0
        %316 = vmatpush1.bf16.msra.mxu0 %v297
        %317 = vmatprep.subr.bf16.mxu0 0
        %318 = vmatpush1.bf16.msra.mxu0 %v296
        %319 = vmatprep.subr.bf16.mxu0 0
        %320 = vmatpush1.bf16.msra.mxu0 %v295
        %321 = vmatprep.subr.bf16.mxu0 0
        %322 = vmatpush1.bf16.msra.mxu0 %v294
        %323 = vmatprep.subr.bf16.mxu0 0
        %324 = vmatpush1.bf16.msra.mxu0 %v293
        %325 = vmatprep.subr.bf16.mxu0 0
        %326 = vmatpush2.bf16.msra.mxu0 0
        %327 = vmatprep.subr.bf16.mxu0 0
        %328 = vmatpush2.bf16.msra.mxu0 0
        %329 = vmatprep.subr.bf16.mxu0 0
        %330 = vmatpush2.bf16.msra.mxu0 0
        %331 = vmatprep.subr.bf16.mxu0 0
        %332 = vmatpush2.bf16.msra.mxu0 0
        %333 = vmatprep.subr.bf16.mxu0 0
        %334 = vmatpush2.bf16.msra.mxu0 0
        %335 = vmatprep.subr.bf16.mxu0 0
        %336 = vmatpush2.bf16.msra.mxu0 0
        %337 = vmatprep.subr.bf16.mxu0 0
        %338 = vmatpush2.bf16.msra.mxu0 0
        %339 = vmatprep.subr.bf16.mxu0 0
        %340 = vmatpush2.bf16.msra.mxu0 0
        %341 = vmatprep.mubr.bf16.mxu0 0
        %342 = vmatmul.mubr.bf16.gmra.mxu0 %v237
        %v343 = vpop.f32.mrf.mxu0
        %v344 = vadd.f32 %v259, %v343
        %v345 = vpop.f32.mrf.mxu0
        %v346 = vpop.f32.mrf.mxu0
        %v347 = vpop.f32.mrf.mxu0
        %348 = vdwg.mxu0
        %v349 = vxor.u32 %v344, 2147483648
        %v350 = vmul.f32 %v349, 1.442695
        %v351 = vpow.pop %v350
        %v352 = vadd.f32 %v351, 1.0
        %v353 = vrcp.pop %v352
        %v354 = vmul.f32 1.0, %v353
        %355 = vst [vmem:[%s232] sm:$0xff] %v354
        %s356 = sand.u32 %s121, 1
        %s357 = scalar_lea.sflag [#allocation4], %s356
        %s358 = sand.u32 %s121, 1
        %s359 = smul.addr %s358, 8
        %s360 = scalar_lea.vmem [#allocation7], %s359
        // Predicated region
        $region41: #{tpu_custom_call.1} parent=31 // pred_check
          %p361 = pneg %p131
        $region42: #{tpu_custom_call.1} parent=31 // pred_check_branch
          %363 = sbr.rel (%p361) target = $region44
        $region43: #{tpu_custom_call.1} parent=31 // pred_region
          %s365 = ssub.s32 128, 128
          %366 = vsyncadd %s357, %s365
          %s367 = sadd.s32 %s26, %s25
          %s368 = smul.addr %s367, 128
          %s369 = scalar_lea.hbm %s3, %s368
          %s371 = sshll.u32 %s360, 4
          %s372 = int_to_ptr.vmem [resolvable:$true] %s371
          %374 = dma.vmem_to_hbm [thread:$0]  %s372, 128, %s369, %s357
        $region44: #{tpu_custom_call.1} parent=31 // pred_fallthru
          _
      $region32: #{tpu_custom_call.1} parent=5 // pred_fallthru
        _
      %p375 = scmp.le.s32.totalorder 2, %s16
      // Predicated region
      $region45: #{tpu_custom_call.1} parent=5 // pred_check
        %p376 = pneg %p375
      $region46: #{tpu_custom_call.1} parent=5 // pred_check_branch
        %378 = sbr.rel (%p376) target = $region48
      $region47: #{tpu_custom_call.1} parent=5 // pred_region
        %s379 = ssub.s32 %s16, 2
        // Predicated region
        $region49: #{tpu_custom_call.1} parent=47 // pred_check
          %p380 = pneg %p137
        $region50: #{tpu_custom_call.1} parent=47 // pred_check_branch
          %382 = sbr.rel (%p380) target = $region52
        $region51: #{tpu_custom_call.1} parent=47 // pred_region
          %s383 = sand.u32 %s122, 1
          %s384 = scalar_lea.sflag [#allocation4], %s383
          %s385 = sand.u32 %s122, 1
          %s386 = smul.addr %s385, 8
          %s387 = scalar_lea.vmem [#allocation7], %s386
          %388 = dma.done %s384, 128
        $region52: #{tpu_custom_call.1} parent=47 // pred_fallthru
          _
      $region48: #{tpu_custom_call.1} parent=5 // pred_fallthru
        _
    $region6: #{tpu_custom_call.1} parent=1 // loop_footer
      %s20 = sadd.s32 1, %s16
    $region7: #{tpu_custom_call.1} parent=1 // loop_footer_branch
      %15 = sbr.rel target = $region3
    $region8: #{tpu_custom_call.1} parent=1 // loop_exit
      _
    %389 = vsyncpa [#allocation3], 1
    %s390 = scalar_lea.sflag [#allocation3], 1
    %391 = vsyncpa %s390, 1
    %392 = vsyncpa [#allocation6], 1
    %393 = vsyncpa [#allocation4], 1
    %s394 = scalar_lea.sflag [#allocation4], 1
    %395 = vsyncpa %s394, 1

</llo_original>
